<compile_context>
chip_gen: v5e
topology: v5e:2x2
jax: 0.10.0
libtpu: 0.0.40
codegen_flags: <defaults>
</compile_context>

<pallas_src>
import jax
import jax.numpy as jnp
from jax.experimental import pallas as pl
from jax.experimental.pallas import tpu as pltpu


def _round_up(x, m):
    return ((x + m - 1) // m) * m


def _cdiv(a, b):
    return (a + b - 1) // b


_TB_MAX = 8192        # cap on batch-tile rows
_TK_FALLBACK = 2048   # K tile for the huge-F streamed-weight fallback


def _vmem_config():
    """Returns (working-set budget, vmem_limit_bytes) sized per TPU generation."""
    phys = None
    try:
        info = pltpu.get_tpu_info()
        phys = getattr(info, "vmem_capacity_bytes", None)
    except Exception:
        phys = None
    if phys is not None and phys >= 100 * 1024 * 1024:
        # v5e / v6e: 128 MiB physical VMEM -- spend most of it.
        return 64 * 1024 * 1024, 100 * 1024 * 1024
    # v7x (64 MiB per TC) or unknown: stay under the 32 MiB scoped default.
    return 26 * 1024 * 1024, 32 * 1024 * 1024


def _layout(F, C, w_bytes, budget):
    """Decide (mode, f_pad, tk, c_pad) -- depends only on F/C/weight dtype."""
    c_pad = _round_up(max(C, 128), 128)          # lane-dense output
    # Resident-weight layout is viable if the full W^T plus a tb=128 f32 x tile
    # (both double-buffered, worst case) fit the budget.
    resident_need = (2 * 128 * F * 4
                     + 2 * F * c_pad * w_bytes
                     + 2 * 128 * c_pad * 4
                     + 2 * c_pad * 4)
    if resident_need <= budget:
        return "resident", F, F, c_pad           # no F padding, no K axis
    tk = _TK_FALLBACK
    return "ktiled", _round_up(F, tk), tk, c_pad


def _pick_tb(B, per_row_bytes, fixed_bytes, budget):
    """Largest power-of-two tb (<= _TB_MAX) within budget, then shrink to
    minimise batch-padding waste at the same grid-step count."""
    tb = 8
    while tb * 2 <= _TB_MAX and (tb * 2) * per_row_bytes + fixed_bytes <= budget:
        tb *= 2
    nb = _cdiv(B, tb)
    tb = max(8, min(tb, _round_up(_cdiv(B, nb), 8)))
    return tb, nb * tb                            # (tb, b_pad)


# ---------------------------------------------------------------------------
# Kernels
# ---------------------------------------------------------------------------
def _linear_kernel_resident(x_ref, w_ref, b_ref, o_ref):
    # x_ref: (TB, F) x-dtype; w_ref: (F, Cpad) compute dtype (resident);
    # b_ref: (1, Cpad) f32; o_ref: (TB, Cpad) f32.
    xv = x_ref[...]
    if xv.dtype != w_ref.dtype:
        xv = xv.astype(w_ref.dtype)               # cast in VMEM, not in HBM
    o_ref[...] = (jnp.dot(xv, w_ref[...], preferred_element_type=jnp.float32)
                  + b_ref[...]).astype(o_ref.dtype)


def _linear_kernel_ktiled(x_ref, w_ref, b_ref, o_ref):
    # Huge-F fallback: accumulate directly into the (revisited) f32 output tile.
    @pl.when(pl.program_id(1) == 0)
    def _():
        o_ref[...] = jnp.broadcast_to(b_ref[...], o_ref.shape)

    xv = x_ref[...]
    if xv.dtype != w_ref.dtype:
        xv = xv.astype(w_ref.dtype)
    o_ref[...] += jnp.dot(xv, w_ref[...], preferred_element_type=jnp.float32)


# ---------------------------------------------------------------------------
# Parameter prep (one-time, outside the hot path)
# ---------------------------------------------------------------------------
def prepare_params(weight, bias, *, compute_dtype=jnp.float32):
    """weight: (C, F) nn.Linear layout; bias: (C,).
    Returns (W^T padded to (f_pad, Cpad) in compute_dtype, bias (1, Cpad) f32)."""
    C, F = weight.shape
    budget, _ = _vmem_config()
    w_bytes = jnp.dtype(compute_dtype).itemsize
    _, f_pad, _, c_pad = _layout(F, C, w_bytes, budget)
    wt = jnp.zeros((f_pad, c_pad), dtype=compute_dtype)
    wt = wt.at[:F, :C].set(weight.T.astype(compute_dtype))
    b2 = jnp.zeros((1, c_pad), dtype=jnp.float32)
    b2 = b2.at[0, :C].set(bias.astype(jnp.float32))
    return wt, b2


# ---------------------------------------------------------------------------
# Forward
# ---------------------------------------------------------------------------
def logistic_regression_forward(x, wt_padded, bias_padded, *, num_classes):
    """x: (B, F) (kept in its own dtype, typically f32); returns (B, num_classes)
    f32 logits, identical semantics to nn.Linear(in_features, num_classes)(x)."""
    B, F = x.shape
    x_bytes = jnp.dtype(x.dtype).itemsize
    w_bytes = jnp.dtype(wt_padded.dtype).itemsize
    budget, vmem_limit = _vmem_config()
    mode, f_pad, tk, c_pad = _layout(F, num_classes, w_bytes, budget)
    assert wt_padded.shape == (f_pad, c_pad) and bias_padded.shape == (1, c_pad), \
        "params were prepared with a different layout"

    if mode == "resident":
        per_row = 2 * F * x_bytes + 2 * c_pad * 4          # x tile + out tile
        fixed = 2 * F * c_pad * w_bytes + 2 * c_pad * 4    # resident W^T + bias
    else:
        per_row = 2 * tk * x_bytes + 2 * c_pad * 4
        fixed = 2 * tk * c_pad * w_bytes + 2 * c_pad * 4
    tb, b_pad = _pick_tb(B, per_row, fixed, budget)

    # Pad x only when strictly needed (batch remainder / huge-F K padding).
    pad_b = b_pad - B
    pad_f = (f_pad - F) if mode == "ktiled" else 0
    xp = x
    if pad_b or pad_f:
        xp = jnp.pad(x, ((0, pad_b), (0, pad_f)))

    if mode == "resident":
        out = pl.pallas_call(
            _linear_kernel_resident,
            out_shape=jax.ShapeDtypeStruct((b_pad, c_pad), jnp.float32),
            grid_spec=pltpu.PrefetchScalarGridSpec(
                num_scalar_prefetch=0,
                grid=(b_pad // tb,),
                in_specs=[
                    pl.BlockSpec((tb, F), lambda i: (i, 0)),          # x tile
                    pl.BlockSpec((f_pad, c_pad), lambda i: (0, 0)),   # W^T resident
                    pl.BlockSpec((1, c_pad), lambda i: (0, 0)),       # bias
                ],
                out_specs=pl.BlockSpec((tb, c_pad), lambda i: (i, 0)),
            ),
            compiler_params=pltpu.CompilerParams(
                dimension_semantics=("parallel",),
                vmem_limit_bytes=vmem_limit,
            ),
        )(xp, wt_padded, bias_padded)
    else:
        out = pl.pallas_call(
            _linear_kernel_ktiled,
            out_shape=jax.ShapeDtypeStruct((b_pad, c_pad), jnp.float32),
            grid_spec=pltpu.PrefetchScalarGridSpec(
                num_scalar_prefetch=0,
                grid=(b_pad // tb, f_pad // tk),
                in_specs=[
                    pl.BlockSpec((tb, tk), lambda i, k: (i, k)),      # x tile
                    pl.BlockSpec((tk, c_pad), lambda i, k: (k, 0)),   # W^T tile
                    pl.BlockSpec((1, c_pad), lambda i, k: (0, 0)),    # bias
                ],
                out_specs=pl.BlockSpec((tb, c_pad), lambda i, k: (i, 0)),
            ),
            compiler_params=pltpu.CompilerParams(
                dimension_semantics=("parallel", "arbitrary"),
                vmem_limit_bytes=vmem_limit,
            ),
        )(xp, wt_padded, bias_padded)

    if b_pad == B and c_pad == num_classes:
        return out
    return out[:B, :num_classes]


if __name__ == "__main__":
    # Small shapes consistent with the module: (batch, in_features) -> (batch, num_classes)
    batch_size = 8
    in_features = 32
    num_classes = 4

    key = jax.random.PRNGKey(0)
    kx, kw, kb = jax.random.split(key, 3)

    x = jax.random.normal(kx, (batch_size, in_features), dtype=jnp.float32)

    # Deterministic parameter init mimicking nn.Linear's uniform(-1/sqrt(F), 1/sqrt(F))
    bound = 1.0 / jnp.sqrt(jnp.float32(in_features))
    weight = jax.random.uniform(
        kw, (num_classes, in_features), dtype=jnp.float32, minval=-bound, maxval=bound
    )
    bias = jax.random.uniform(
        kb, (num_classes,), dtype=jnp.float32, minval=-bound, maxval=bound
    )

    ref = x @ weight.T + bias

    # f32 compute path: exact nn.Linear semantics.
    wt32, b32 = prepare_params(weight, bias, compute_dtype=jnp.float32)
    logits32 = logistic_regression_forward(x, wt32, b32, num_classes=num_classes)
    jax.block_until_ready(logits32)
    assert logits32.shape == (batch_size, num_classes)
    assert jnp.allclose(logits32, ref, atol=1e-4, rtol=1e-4)

    # bf16 compute path: x stays f32 in HBM, cast to bf16 in VMEM inside the
    # kernel (halves weight traffic; f32 MXU accumulation; ~bf16 precision).
    wt16, b16 = prepare_params(weight, bias, compute_dtype=jnp.bfloat16)
    logits16 = logistic_regression_forward(x, wt16, b16, num_classes=num_classes)
    jax.block_until_ready(logits16)
    assert logits16.shape == (batch_size, num_classes)
    assert jnp.allclose(logits16, ref, atol=5e-2, rtol=5e-2)

    print("KERNEL_OK")
</pallas_src>

<mosaic_0001>
module attributes {stable_mosaic.version = 11 : i64} {
  func.func @_linear_kernel_resident(%arg0: i32, %arg1: memref<8x32xf32, #tpu.memory_space<vmem>>, %arg2: memref<32x128xf32, #tpu.memory_space<vmem>>, %arg3: memref<1x128xf32, #tpu.memory_space<vmem>>, %arg4: memref<8x128xf32, #tpu.memory_space<vmem>>) attributes {dimension_semantics = [#tpu.dimension_semantics<parallel>], iteration_bounds = array<i64: 1>, scalar_prefetch = 0 : i64, scratch_operands = 0 : i64, tpu.core_type = #tpu.core_type<tc>, window_params = [{transform_indices = @transform_0, window_bounds = array<i64: 8, 32>}, {pipeline_mode = #tpu.pipeline_mode<synchronous>, transform_indices = @transform_1, window_bounds = array<i64: 32, 128>}, {pipeline_mode = #tpu.pipeline_mode<synchronous>, transform_indices = @transform_2, window_bounds = array<i64: 1, 128>}, {transform_indices = @transform_3, window_bounds = array<i64: 8, 128>}]} {
    %c0 = arith.constant 0 : index
    %c0_0 = arith.constant 0 : index
    %0 = vector.load %arg1[%c0, %c0_0] : memref<8x32xf32, #tpu.memory_space<vmem>>, vector<8x32xf32>
    %c0_1 = arith.constant 0 : index
    %c0_2 = arith.constant 0 : index
    %1 = vector.load %arg2[%c0_1, %c0_2] : memref<32x128xf32, #tpu.memory_space<vmem>>, vector<32x128xf32>
    %cst = arith.constant dense<0.000000e+00> : vector<8x128xf32>
    %2 = tpu.matmul %0, %1, %cst {dimension_numbers = #tpu.dot_dimension_numbers<[1], [0], [0], [1], [0, 0, 1, 1], [], []>} : vector<8x32xf32>, vector<32x128xf32>, vector<8x128xf32> -> vector<8x128xf32>
    %c0_3 = arith.constant 0 : index
    %c0_4 = arith.constant 0 : index
    %3 = vector.load %arg3[%c0_3, %c0_4] : memref<1x128xf32, #tpu.memory_space<vmem>>, vector<1x128xf32>
    %4 = vector.broadcast %3 : vector<1x128xf32> to vector<8x128xf32>
    %5 = arith.addf %2, %4 : vector<8x128xf32>
    %c0_5 = arith.constant 0 : index
    %c0_6 = arith.constant 0 : index
    %6 = vector.load %arg4[%c0_5, %c0_6] : memref<8x128xf32, #tpu.memory_space<vmem>>, vector<8x128xf32>
    tpu.vector_store %arg4[%c0_5, %c0_6], %5 {strides = array<i32>} : memref<8x128xf32, #tpu.memory_space<vmem>>, vector<8x128xf32>,
    return
  }
  func.func @transform_0(%arg0: i32) -> (i32, i32) {
    %c0_i32 = arith.constant 0 : i32
    %c0_i32_0 = arith.constant 0 : i32
    return %arg0, %c0_i32 : i32, i32
  }
  func.func @transform_1(%arg0: i32) -> (i32, i32) {
    %c0_i32 = arith.constant 0 : i32
    %c0_i32_0 = arith.constant 0 : i32
    %c0_i32_1 = arith.constant 0 : i32
    return %c0_i32, %c0_i32_0 : i32, i32
  }
  func.func @transform_2(%arg0: i32) -> (i32, i32) {
    %c0_i32 = arith.constant 0 : i32
    %c0_i32_0 = arith.constant 0 : i32
    %c0_i32_1 = arith.constant 0 : i32
    return %c0_i32, %c0_i32_0 : i32, i32
  }
  func.func @transform_3(%arg0: i32) -> (i32, i32) {
    %c0_i32 = arith.constant 0 : i32
    %c0_i32_0 = arith.constant 0 : i32
    return %arg0, %c0_i32 : i32, i32
  }
}

</mosaic_0001>

<llo_original>
// kernel: tpu_custom_call.1
$region0: #{tpu_custom_call.1}
  #allocation0 [shape = 'u32[]', space=smem, size = 0x4, offset = 0x4, fixed_abs, tag = 'smem constant byte address 0x4 - core index']
  #allocation1 [shape = 'u32[72,128]{1,0:T(1,128)}', space=vmem, size = 0x9000, scoped, tag = 'internal scratch']
  %s0 = inlined_call_operand.hbm [shape: f32[8,32], index: 0, kind: input, shape index: {}]
  %s1 = inlined_call_operand.hbm [shape: f32[32,128], index: 1, kind: input, shape index: {}]
  %s2 = inlined_call_operand.vmem [shape: f32[1,128], index: 2, kind: input, shape index: {}]
  %s3 = inlined_call_operand.hbm [shape: f32[8,128], index: 3, kind: output, shape index: {}]
  %s4 = sld [smem:[#allocation0]]
  $region30: #{tpu_custom_call.1} parent=0
    _
  %s6 = ssub.s32 1, %s4
  %s7 = scalar_select 0, %s6, %s4
  $region1: #{tpu_custom_call.1} parent=0
    #allocation2 [shape = 'u8[4096]{0}', space=vmem, size = 0x1000, scoped, tag = 'input window, operand 0, single buffered']
    #allocation3 [shape = 's32[1]{0}', space=sflag, size = 0x4, scoped, tag = 'scoped memory for tpu_custom_call.1']
    #allocation4 [shape = 's32[1]{0}', space=sflag, size = 0x4, scoped, tag = 'scoped memory for tpu_custom_call.1']
    #allocation5 [shape = 'u8[16384]{0}', space=vmem, size = 0x4000, scoped, tag = 'input window, operand 1, single buffered']
    #allocation6 [shape = 's32[1]{0}', space=sflag, size = 0x4, scoped, tag = 'scoped memory for tpu_custom_call.1']
    #allocation7 [shape = 'u8[4096]{0}', space=vmem, size = 0x1000, scoped, tag = 'output window, operand 0, single buffered']
    %8 = vsyncpa [#allocation3], 0
    %9 = vsyncpa [#allocation6], 0
    %10 = vsyncpa [#allocation4], 0
    // Predicated region
    $region2: #{tpu_custom_call.1} parent=1 // pred_check
      _
    $region3: #{tpu_custom_call.1} parent=1 // pred_check_branch
      %12 = sbr.rel (0) target = $region5
    $region4: #{tpu_custom_call.1} parent=1 // pred_region
      %14 = vsyncadd [#allocation3], 0
      %s16 = sshll.u32 %s0, 4
      %s17 = int_to_ptr.hbm [resolvable:$true] %s16
      %s18 = sshll.u32 [#allocation2], 4
      %s19 = int_to_ptr.vmem [resolvable:$true] %s18
      %21 = dma.hbm_to_vmem [thread:$0]  %s17, 128, %s19, [#allocation3]
    $region5: #{tpu_custom_call.1} parent=1 // pred_fallthru
      _
    // Predicated region
    $region6: #{tpu_custom_call.1} parent=1 // pred_check
      _
    $region7: #{tpu_custom_call.1} parent=1 // pred_check_branch
      %23 = sbr.rel (0) target = $region9
    $region8: #{tpu_custom_call.1} parent=1 // pred_region
      %25 = vsyncadd [#allocation6], 0
      %s26 = sshll.u32 %s1, 4
      %s27 = int_to_ptr.hbm [resolvable:$true] %s26
      %s28 = sshll.u32 [#allocation5], 4
      %s29 = int_to_ptr.vmem [resolvable:$true] %s28
      %34 = dma.hbm_to_vmem [thread:$0]  %s27, 512, %s29, [#allocation6], 128, 128, 8
    $region9: #{tpu_custom_call.1} parent=1 // pred_fallthru
      _
    // Predicated region
    $region10: #{tpu_custom_call.1} parent=1 // pred_check
      _
    $region11: #{tpu_custom_call.1} parent=1 // pred_check_branch
      %36 = sbr.rel (0) target = $region13
    $region12: #{tpu_custom_call.1} parent=1 // pred_region
      _
    $region13: #{tpu_custom_call.1} parent=1 // pred_fallthru
      _
    // Predicated region
    $region14: #{tpu_custom_call.1} parent=1 // pred_check
      _
    $region15: #{tpu_custom_call.1} parent=1 // pred_check_branch
      %38 = sbr.rel (0) target = $region17
    $region16: #{tpu_custom_call.1} parent=1 // pred_region
      %40 = dma.done [#allocation3], 128
    $region17: #{tpu_custom_call.1} parent=1 // pred_fallthru
      _
    // Predicated region
    $region18: #{tpu_custom_call.1} parent=1 // pred_check
      _
    $region19: #{tpu_custom_call.1} parent=1 // pred_check_branch
      %42 = sbr.rel (0) target = $region21
    $region20: #{tpu_custom_call.1} parent=1 // pred_region
      %44 = dma.done [#allocation6], 512
    $region21: #{tpu_custom_call.1} parent=1 // pred_fallthru
      _
    %v45 = vld [vmem:[#allocation2] sm:$0xff]
    %v46 = vld [vmem:[#allocation5] sm:$0xff]
    %v47 = vld [vmem:[#allocation5 + $0x8] sm:$0xff]
    %v48 = vld [vmem:[#allocation5 + $0x10] sm:$0xff]
    %v49 = vld [vmem:[#allocation5 + $0x18] sm:$0xff]
    %v50 = vld [vmem:[%s2] sm:$0x1]
    %v52 = vperm.slane %v50, 0
    %vm54 = vcmask 261120
    %v56 = vsel %vm54, %v45, 0
    %58 = vmatpush.msra.mxu0 0.0
    %59 = vmatpush.msra.mxu0 0.0
    %60 = vmatpush.msra.mxu0 0.0
    %61 = vmatpush.msra.mxu0 0.0
    %62 = vmatpush.msra.mxu0 0.0
    %63 = vmatpush.msra.mxu0 0.0
    %64 = vmatpush.msra.mxu0 0.0
    %65 = vmatpush.msra.mxu0 0.0
    %66 = vmatpush.msra.mxu0 0.0
    %67 = vmatpush.msra.mxu0 0.0
    %68 = vmatpush.msra.mxu0 0.0
    %69 = vmatpush.msra.mxu0 0.0
    %70 = vmatpush.msra.mxu0 %v49
    %71 = vmatpush.msra.mxu0 %v48
    %72 = vmatpush.msra.mxu0 %v47
    %73 = vmatpush.msra.mxu0 %v46
    %74 = vmatmul.f32.gmra.mxu0 %v56
    %v75 = vpop.f32.mrf.mxu0
    %v76 = vadd.f32 %v52, %v75
    %77 = vdwg.mxu0
    %78 = vst [vmem:[#allocation7] sm:$0xff] %v76
    // Predicated region
    $region22: #{tpu_custom_call.1} parent=1 // pred_check
      _
    $region23: #{tpu_custom_call.1} parent=1 // pred_check_branch
      %80 = sbr.rel (0) target = $region25
    $region24: #{tpu_custom_call.1} parent=1 // pred_region
      %82 = vsyncadd [#allocation4], 0
      %s84 = sshll.u32 [#allocation7], 4
      %s85 = int_to_ptr.vmem [resolvable:$true] %s84
      %s86 = sshll.u32 %s3, 4
      %s87 = int_to_ptr.hbm [resolvable:$true] %s86
      %89 = dma.vmem_to_hbm [thread:$0]  %s85, 128, %s87, [#allocation4]
    $region25: #{tpu_custom_call.1} parent=1 // pred_fallthru
      _
    // Predicated region
    $region26: #{tpu_custom_call.1} parent=1 // pred_check
      _
    $region27: #{tpu_custom_call.1} parent=1 // pred_check_branch
      %91 = sbr.rel (0) target = $region29
    $region28: #{tpu_custom_call.1} parent=1 // pred_region
      %93 = dma.done [#allocation4], 128
    $region29: #{tpu_custom_call.1} parent=1 // pred_fallthru
      _
    %94 = vsyncpa [#allocation3], 1
    %95 = vsyncpa [#allocation6], 1
    %96 = vsyncpa [#allocation4], 1

</llo_original>
